<compile_context>
chip_gen: v5e
topology: v5e:2x2
jax: 0.10.0
libtpu: 0.0.40
codegen_flags: <defaults>
</compile_context>

<pallas_src>
import functools

import jax
import jax.numpy as jnp
from jax.experimental import pallas as pl
from jax.experimental.pallas import tpu as pltpu


def _ledidi_kernel(x_ref, w_ref, u_ref, out_ref, *, eps: float):
    """x_ref, w_ref: (1, C, TL); u_ref: (B, 1, TL); out_ref: (B, C, TL)."""
    # Batch-invariant per-position channel logits.  (x is one-hot, but we keep
    # the exact log(x + eps) of the reference module; only C*TL logs per tile.)
    logits = jnp.log(x_ref[...] + eps) + w_ref[...]                    # (1, C, TL)
    C = logits.shape[1]

    # Unrolled running max over the C channels: pure VPU, no XLU reduction.
    chan = [logits[:, c:c + 1, :] for c in range(C)]                   # C x (1, 1, TL)
    m = chan[0]
    for c in range(1, C):
        m = jnp.maximum(m, chan[c])

    # Unnormalized softmax + prefix sums (per-position channel CDF).
    cum = []
    run = None
    for c in range(C):
        e = jnp.exp(chan[c] - m)                                       # (1, 1, TL)
        run = e if run is None else run + e
        cum.append(run)
    lo = jnp.concatenate([jnp.zeros_like(cum[0])] + cum[:-1], axis=1)  # (1, C, TL)
    hi = jnp.concatenate(cum, axis=1)                                  # (1, C, TL)

    # Inverse-CDF categorical draw: t = u * total lies in [0, total), so exactly
    # one half-open interval [lo_c, hi_c) matches per (batch, position).
    t = u_ref[...] * cum[-1]                                           # (B, 1, TL)
    out_ref[...] = ((t >= lo) & (t < hi)).astype(out_ref.dtype)        # (B, C, TL)


def _pick_tile(length: int) -> int:
    """Largest lane-aligned tile (<= 4096) dividing L; fall back to full L."""
    if length % 128 == 0:
        for tl in (4096, 2048, 1024, 512, 256, 128):
            if length % tl == 0:
                return tl
    return length


def _draw_uniforms(key, batch_size: int, length: int):
    # One uniform in [0, 1) per (batch, position); shared across channels.
    return jax.random.uniform(key, (batch_size, 1, length), dtype=jnp.float32)


def ledidi_forward(x, weights, key, *, batch_size=16, tau=1.0, eps=1e-4, tile_l=None):
    """Pallas implementation of Ledidi.forward.

    x:       (1, 4, L) float32 one-hot sequence.
    weights: (1, 4, L) float32 design weights.
    key:     jax.random key for the sampling noise.
    Returns (batch_size, 4, L) float32 one-hot edited sequences.

    Note: tau has no effect on the hard forward value (argmax of
    (logits + gumbel)/tau is tau-invariant); it only matters for the
    soft / straight-through backward path, which is not implemented here.
    """
    assert x.ndim == 3 and x.shape[0] == 1 and x.shape[1] == 4
    assert weights.shape == x.shape
    assert tau > 0.0
    del tau  # hard forward sample is tau-invariant

    _, C, L = x.shape
    B = int(batch_size)
    TL = int(tile_l) if tile_l is not None else _pick_tile(L)
    assert L % TL == 0, "tile_l must divide the sequence length"
    grid = (L // TL,)

    u = _draw_uniforms(key, B, L)

    kernel = functools.partial(_ledidi_kernel, eps=float(eps))
    return pl.pallas_call(
        kernel,
        out_shape=jax.ShapeDtypeStruct((B, C, L), jnp.float32),
        grid=grid,
        in_specs=[
            pl.BlockSpec((1, C, TL), lambda i: (0, 0, i)),   # x
            pl.BlockSpec((1, C, TL), lambda i: (0, 0, i)),   # weights
            pl.BlockSpec((B, 1, TL), lambda i: (0, 0, i)),   # uniform noise
        ],
        out_specs=pl.BlockSpec((B, C, TL), lambda i: (0, 0, i)),
        compiler_params=pltpu.CompilerParams(
            dimension_semantics=("parallel",),       # shard L tiles over TCs (v7x)
            vmem_limit_bytes=32 * 1024 * 1024,       # safe on v5e/v6e/v7x; blocks ~3 MiB
        ),
    )(x.astype(jnp.float32), weights.astype(jnp.float32), u)


def _ledidi_reference(x, weights, u, eps):
    """Pure-JAX mirror of the kernel math (same uniforms -> same samples)."""
    logits = jnp.log(x + eps) + weights
    C = logits.shape[1]
    chan = [logits[:, c:c + 1, :] for c in range(C)]
    m = chan[0]
    for c in range(1, C):
        m = jnp.maximum(m, chan[c])
    cum = []
    run = None
    for c in range(C):
        e = jnp.exp(chan[c] - m)
        run = e if run is None else run + e
        cum.append(run)
    lo = jnp.concatenate([jnp.zeros_like(cum[0])] + cum[:-1], axis=1)
    hi = jnp.concatenate(cum, axis=1)
    t = u * cum[-1]
    return ((t >= lo) & (t < hi)).astype(jnp.float32)


if __name__ == "__main__":
    key = jax.random.PRNGKey(0)
    k_seq, k_noise = jax.random.split(key)

    C, L = 4, 1024          # small lane-aligned nucleotide sequence
    BATCH = 16              # Ledidi default batch_size
    TAU, EPS = 1.0, 1e-4
    TILE_L = 256            # small tile so the demo exercises a multi-step grid

    # Deterministic one-hot input sequence (1, 4, L).
    cats = jax.random.randint(k_seq, (L,), 0, C)
    x = jax.nn.one_hot(cats, C, dtype=jnp.float32).T[None, :, :]       # (1, 4, L)
    # Ledidi.__init__ default: zero-initialized design weights (1, 4, L).
    weights = jnp.zeros((1, C, L), dtype=jnp.float32)

    out = ledidi_forward(x, weights, k_noise, batch_size=BATCH,
                         tau=TAU, eps=EPS, tile_l=TILE_L)
    out = jax.block_until_ready(out)

    # Structural checks: shape / dtype / exactly one-hot along the channel dim.
    assert out.shape == (BATCH, C, L), out.shape
    assert out.dtype == jnp.float32
    assert bool(jnp.all(jnp.sum(out, axis=1) == 1.0)), "not one-hot over channels"
    assert bool(jnp.all((out == 0.0) | (out == 1.0)))

    # With zero weights, edits are rare (P(edit) ~ 3*eps): output ~= input.
    same_pos = jnp.all(out == x, axis=1)                               # (BATCH, L)
    assert float(jnp.mean(same_pos.astype(jnp.float32))) > 0.9

    # Compare against a pure-JAX mirror fed the same uniforms (tiny budget for
    # exp/log ulp differences flipping a CDF boundary comparison).
    u = _draw_uniforms(k_noise, BATCH, L)
    ref = _ledidi_reference(x, weights, u, EPS)
    mismatch = jnp.mean(jnp.any(out != ref, axis=1).astype(jnp.float32))
    assert float(mismatch) < 0.01, float(mismatch)

    print("KERNEL_OK")
</pallas_src>

<mosaic_0001>
module attributes {stable_mosaic.version = 11 : i64} {
  func.func @_ledidi_kernel(%arg0: i32, %arg1: memref<1x4x256xf32, #tpu.memory_space<vmem>>, %arg2: memref<1x4x256xf32, #tpu.memory_space<vmem>>, %arg3: memref<16x1x256xf32, #tpu.memory_space<vmem>>, %arg4: memref<16x4x256xf32, #tpu.memory_space<vmem>>) attributes {dimension_semantics = [#tpu.dimension_semantics<parallel>], iteration_bounds = array<i64: 4>, scalar_prefetch = 0 : i64, scratch_operands = 0 : i64, tpu.core_type = #tpu.core_type<tc>, window_params = [{transform_indices = @transform_0, window_bounds = array<i64: 1, 4, 256>}, {transform_indices = @transform_1, window_bounds = array<i64: 1, 4, 256>}, {transform_indices = @transform_2, window_bounds = array<i64: 16, 1, 256>}, {transform_indices = @transform_3, window_bounds = array<i64: 16, 4, 256>}]} {
    %c0 = arith.constant 0 : index
    %c0_0 = arith.constant 0 : index
    %c0_1 = arith.constant 0 : index
    %0 = vector.load %arg1[%c0, %c0_0, %c0_1] : memref<1x4x256xf32, #tpu.memory_space<vmem>>, vector<1x4x256xf32>
    %cst = arith.constant 9.99999974E-5 : f32
    %1 = vector.broadcast %cst : f32 to vector<1x4x256xf32>
    %2 = arith.addf %0, %1 : vector<1x4x256xf32>
    %3 = math.log %2 : vector<1x4x256xf32>
    %c0_2 = arith.constant 0 : index
    %c0_3 = arith.constant 0 : index
    %c0_4 = arith.constant 0 : index
    %4 = vector.load %arg2[%c0_2, %c0_3, %c0_4] : memref<1x4x256xf32, #tpu.memory_space<vmem>>, vector<1x4x256xf32>
    %5 = arith.addf %3, %4 : vector<1x4x256xf32>
    %6 = vector.extract_strided_slice %5 {offsets = [0, 0, 0], sizes = [1, 1, 256], strides = [1, 1, 1]} : vector<1x4x256xf32> to vector<1x1x256xf32>
    %7 = vector.extract_strided_slice %5 {offsets = [0, 1, 0], sizes = [1, 1, 256], strides = [1, 1, 1]} : vector<1x4x256xf32> to vector<1x1x256xf32>
    %8 = vector.extract_strided_slice %5 {offsets = [0, 2, 0], sizes = [1, 1, 256], strides = [1, 1, 1]} : vector<1x4x256xf32> to vector<1x1x256xf32>
    %9 = vector.extract_strided_slice %5 {offsets = [0, 3, 0], sizes = [1, 1, 256], strides = [1, 1, 1]} : vector<1x4x256xf32> to vector<1x1x256xf32>
    %10 = arith.maximumf %6, %7 : vector<1x1x256xf32>
    %11 = arith.maximumf %10, %8 : vector<1x1x256xf32>
    %12 = arith.maximumf %11, %9 : vector<1x1x256xf32>
    %13 = arith.subf %6, %12 : vector<1x1x256xf32>
    %14 = math.exp %13 : vector<1x1x256xf32>
    %15 = arith.subf %7, %12 : vector<1x1x256xf32>
    %16 = math.exp %15 : vector<1x1x256xf32>
    %17 = arith.addf %14, %16 : vector<1x1x256xf32>
    %18 = arith.subf %8, %12 : vector<1x1x256xf32>
    %19 = math.exp %18 : vector<1x1x256xf32>
    %20 = arith.addf %17, %19 : vector<1x1x256xf32>
    %21 = arith.subf %9, %12 : vector<1x1x256xf32>
    %22 = math.exp %21 : vector<1x1x256xf32>
    %23 = arith.addf %20, %22 : vector<1x1x256xf32>
    %cst_5 = arith.constant 0.000000e+00 : f32
    %24 = vector.broadcast %cst_5 : f32 to vector<1x1x256xf32>
    %25 = tpu.concatenate %24, %14, %17, %20 in 1 : vector<1x1x256xf32>, vector<1x1x256xf32>, vector<1x1x256xf32>, vector<1x1x256xf32> -> vector<1x4x256xf32>
    %26 = tpu.concatenate %14, %17, %20, %23 in 1 : vector<1x1x256xf32>, vector<1x1x256xf32>, vector<1x1x256xf32>, vector<1x1x256xf32> -> vector<1x4x256xf32>
    %c0_6 = arith.constant 0 : index
    %c0_7 = arith.constant 0 : index
    %c0_8 = arith.constant 0 : index
    %27 = vector.load %arg3[%c0_6, %c0_7, %c0_8] : memref<16x1x256xf32, #tpu.memory_space<vmem>>, vector<16x1x256xf32>
    %28 = vector.broadcast %23 : vector<1x1x256xf32> to vector<16x1x256xf32>
    %29 = arith.mulf %27, %28 : vector<16x1x256xf32>
    %30 = vector.broadcast %29 : vector<16x1x256xf32> to vector<16x4x256xf32>
    %31 = vector.broadcast %25 : vector<1x4x256xf32> to vector<16x4x256xf32>
    %32 = arith.cmpf oge, %30, %31 : vector<16x4x256xf32>
    %33 = vector.broadcast %29 : vector<16x1x256xf32> to vector<16x4x256xf32>
    %34 = vector.broadcast %26 : vector<1x4x256xf32> to vector<16x4x256xf32>
    %35 = arith.cmpf olt, %33, %34 : vector<16x4x256xf32>
    %36 = arith.andi %32, %35 : vector<16x4x256xi1>
    %37 = arith.extui %36 : vector<16x4x256xi1> to vector<16x4x256xi32>
    %38 = arith.sitofp %37 : vector<16x4x256xi32> to vector<16x4x256xf32>
    %c0_9 = arith.constant 0 : index
    %c0_10 = arith.constant 0 : index
    %c0_11 = arith.constant 0 : index
    %39 = vector.load %arg4[%c0_9, %c0_10, %c0_11] : memref<16x4x256xf32, #tpu.memory_space<vmem>>, vector<16x4x256xf32>
    tpu.vector_store %arg4[%c0_9, %c0_10, %c0_11], %38 {strides = array<i32>} : memref<16x4x256xf32, #tpu.memory_space<vmem>>, vector<16x4x256xf32>,
    return
  }
  func.func @transform_0(%arg0: i32) -> (i32, i32, i32) {
    %c0_i32 = arith.constant 0 : i32
    %c0_i32_0 = arith.constant 0 : i32
    %c0_i32_1 = arith.constant 0 : i32
    return %c0_i32, %c0_i32_0, %arg0 : i32, i32, i32
  }
  func.func @transform_1(%arg0: i32) -> (i32, i32, i32) {
    %c0_i32 = arith.constant 0 : i32
    %c0_i32_0 = arith.constant 0 : i32
    %c0_i32_1 = arith.constant 0 : i32
    return %c0_i32, %c0_i32_0, %arg0 : i32, i32, i32
  }
  func.func @transform_2(%arg0: i32) -> (i32, i32, i32) {
    %c0_i32 = arith.constant 0 : i32
    %c0_i32_0 = arith.constant 0 : i32
    %c0_i32_1 = arith.constant 0 : i32
    return %c0_i32, %c0_i32_0, %arg0 : i32, i32, i32
  }
  func.func @transform_3(%arg0: i32) -> (i32, i32, i32) {
    %c0_i32 = arith.constant 0 : i32
    %c0_i32_0 = arith.constant 0 : i32
    %c0_i32_1 = arith.constant 0 : i32
    return %c0_i32, %c0_i32_0, %arg0 : i32, i32, i32
  }
}

</mosaic_0001>

<llo_original>
// kernel: tpu_custom_call.1
$region0: #{tpu_custom_call.1}
  #allocation0 [shape = 'u32[]', space=smem, size = 0x4, offset = 0x4, fixed_abs, tag = 'smem constant byte address 0x4 - core index']
  #allocation1 [shape = 'u32[72,128]{1,0:T(1,128)}', space=vmem, size = 0x9000, scoped, tag = 'internal scratch']
  %s0 = inlined_call_operand.hbm [shape: f32[1,4,1024], index: 0, kind: input, shape index: {}]
  %s1 = inlined_call_operand.hbm [shape: f32[1,4,1024], index: 1, kind: input, shape index: {}]
  %s2 = inlined_call_operand.hbm [shape: f32[16,1,1024], index: 2, kind: input, shape index: {}]
  %s3 = inlined_call_operand.hbm [shape: f32[16,4,1024], index: 3, kind: output, shape index: {}]
  %s4 = sld [smem:[#allocation0]]
  $region57: #{tpu_custom_call.1} parent=0
    _
  %s6 = ssub.s32 1, %s4
  %s7 = scalar_select 0, %s6, %s4
  $region1: #{tpu_custom_call.1} parent=0
    #allocation2 [shape = 'u8[8192]{0}', space=vmem, size = 0x2000, scoped, tag = 'input window, operand 0']
    #allocation3 [shape = 's32[2]{0}', space=sflag, size = 0x8, scoped, tag = 'scoped memory for tpu_custom_call.1']
    #allocation4 [shape = 's32[2]{0}', space=sflag, size = 0x8, scoped, tag = 'scoped memory for tpu_custom_call.1']
    #allocation5 [shape = 'u8[8192]{0}', space=vmem, size = 0x2000, scoped, tag = 'input window, operand 1']
    #allocation6 [shape = 's32[2]{0}', space=sflag, size = 0x8, scoped, tag = 'scoped memory for tpu_custom_call.1']
    #allocation7 [shape = 'u8[32768]{0}', space=vmem, size = 0x8000, scoped, tag = 'input window, operand 2']
    #allocation8 [shape = 'u8[131072]{0}', space=vmem, size = 0x20000, scoped, tag = 'output window, operand 0']
    %8 = vsyncpa [#allocation3], 0
    %s9 = scalar_lea.sflag [#allocation3], 1
    %10 = vsyncpa %s9, 0
    %11 = vsyncpa [#allocation6], 0
    %s12 = scalar_lea.sflag [#allocation6], 1
    %13 = vsyncpa %s12, 0
    %14 = vsyncpa [#allocation4], 0
    %s15 = scalar_lea.sflag [#allocation4], 1
    %16 = vsyncpa %s15, 0
    loop: start=0, step=1, limit=6
    $region2: #{tpu_custom_call.1} parent=1 // loop_pre_header
      _
    $region3: #{tpu_custom_call.1} parent=1 // loop_header
      %s18 = sphi 0, %s22
      %p19 = scmp.ge.s32.totalorder %s18, 6
      %s28 = sphi 0, %s30
      %s31 = sphi 0, %s28
      %s32 = sphi 0, %s31
      %s48 = sphi 0, %s32
      %s54 = sphi 0, %s56
      %s57 = sphi 0, %s54
      %s58 = sphi 0, %s57
      %s74 = sphi 0, %s58
      %s80 = sphi 0, %s82
      %s83 = sphi 0, %s80
      %s84 = sphi 0, %s83
      %s100 = sphi 0, %s84
      %s106 = sphi 0, %s108
      %s109 = sphi 0, %s106
      %s110 = sphi 0, %s109
      %s126 = sphi 0, %s110
    $region4: #{tpu_custom_call.1} parent=1 // loop_header_branch
      %21 = sbr.rel (%p19) target = $region8
    $region5: #{tpu_custom_call.1} parent=1 // loop_body
      %s23 = ssub.s32 %s18, 1
      %s24 = ssub.s32 %s18, 2
      %s25 = sadd.s32 %s18, 1
      %s26 = ssub.s32 %s18, %s25
      %p27 = scmp.eq.s32.totalorder %s26, 0
      %s29 = sadd.s32 %s28, 1
      %s30 = scalar_select %p27, %s28, %s29
      %p33 = pneg %p27
      %p34 = scmp.eq.s32.totalorder %s18, 3
      %p35 = por %p33, %p34
      %p36 = scmp.ne.s32.totalorder %s28, %s31
      %p37 = scmp.eq.s32.totalorder %s18, 0
      %p38 = por %p36, %p37
      %p39 = scmp.ne.s32.totalorder %s28, %s31
      %p40 = scmp.eq.s32.totalorder %s23, 3
      %p41 = por %p39, %p40
      %p42 = scmp.ne.s32.totalorder %s31, %s32
      %p43 = scmp.eq.s32.totalorder %s23, 0
      %p44 = por %p42, %p43
      %p45 = scmp.ne.s32.totalorder %s31, %s32
      %p46 = scmp.eq.s32.totalorder %s24, 3
      %p47 = por %p45, %p46
      %p49 = scmp.ne.s32.totalorder %s32, %s48
      %p50 = scmp.eq.s32.totalorder %s24, 0
      %p51 = por %p49, %p50
      %s52 = ssub.s32 %s18, %s25
      %p53 = scmp.eq.s32.totalorder %s52, 0
      %s55 = sadd.s32 %s54, 1
      %s56 = scalar_select %p53, %s54, %s55
      %p59 = pneg %p53
      %p60 = scmp.eq.s32.totalorder %s18, 3
      %p61 = por %p59, %p60
      %p62 = scmp.ne.s32.totalorder %s54, %s57
      %p63 = scmp.eq.s32.totalorder %s18, 0
      %p64 = por %p62, %p63
      %p65 = scmp.ne.s32.totalorder %s54, %s57
      %p66 = scmp.eq.s32.totalorder %s23, 3
      %p67 = por %p65, %p66
      %p68 = scmp.ne.s32.totalorder %s57, %s58
      %p69 = scmp.eq.s32.totalorder %s23, 0
      %p70 = por %p68, %p69
      %p71 = scmp.ne.s32.totalorder %s57, %s58
      %p72 = scmp.eq.s32.totalorder %s24, 3
      %p73 = por %p71, %p72
      %p75 = scmp.ne.s32.totalorder %s58, %s74
      %p76 = scmp.eq.s32.totalorder %s24, 0
      %p77 = por %p75, %p76
      %s78 = ssub.s32 %s18, %s25
      %p79 = scmp.eq.s32.totalorder %s78, 0
      %s81 = sadd.s32 %s80, 1
      %s82 = scalar_select %p79, %s80, %s81
      %p85 = pneg %p79
      %p86 = scmp.eq.s32.totalorder %s18, 3
      %p87 = por %p85, %p86
      %p88 = scmp.ne.s32.totalorder %s80, %s83
      %p89 = scmp.eq.s32.totalorder %s18, 0
      %p90 = por %p88, %p89
      %p91 = scmp.ne.s32.totalorder %s80, %s83
      %p92 = scmp.eq.s32.totalorder %s23, 3
      %p93 = por %p91, %p92
      %p94 = scmp.ne.s32.totalorder %s83, %s84
      %p95 = scmp.eq.s32.totalorder %s23, 0
      %p96 = por %p94, %p95
      %p97 = scmp.ne.s32.totalorder %s83, %s84
      %p98 = scmp.eq.s32.totalorder %s24, 3
      %p99 = por %p97, %p98
      %p101 = scmp.ne.s32.totalorder %s84, %s100
      %p102 = scmp.eq.s32.totalorder %s24, 0
      %p103 = por %p101, %p102
      %s104 = ssub.s32 %s18, %s25
      %p105 = scmp.eq.s32.totalorder %s104, 0
      %s107 = sadd.s32 %s106, 1
      %s108 = scalar_select %p105, %s106, %s107
      %p111 = pneg %p105
      %p112 = scmp.eq.s32.totalorder %s18, 3
      %p113 = por %p111, %p112
      %p114 = scmp.ne.s32.totalorder %s106, %s109
      %p115 = scmp.eq.s32.totalorder %s18, 0
      %p116 = por %p114, %p115
      %p117 = scmp.ne.s32.totalorder %s106, %s109
      %p118 = scmp.eq.s32.totalorder %s23, 3
      %p119 = por %p117, %p118
      %p120 = scmp.ne.s32.totalorder %s109, %s110
      %p121 = scmp.eq.s32.totalorder %s23, 0
      %p122 = por %p120, %p121
      %p123 = scmp.ne.s32.totalorder %s109, %s110
      %p124 = scmp.eq.s32.totalorder %s24, 3
      %p125 = por %p123, %p124
      %p127 = scmp.ne.s32.totalorder %s110, %s126
      %p128 = scmp.eq.s32.totalorder %s24, 0
      %p129 = por %p127, %p128
      %p130 = scmp.le.s32.totalorder 1, %s18
      %p131 = scmp.lt.s32.totalorder %s18, 5
      %p132 = pnand %p130, %p131
      %p133 = pneg %p132
      // Predicated region
      $region9: #{tpu_custom_call.1} parent=5 // pred_check
        _
      $region10: #{tpu_custom_call.1} parent=5 // pred_check_branch
        %135 = sbr.rel (%p132) target = $region12
      $region11: #{tpu_custom_call.1} parent=5 // pred_region
        %s136 = ssub.s32 %s18, 1
      $region12: #{tpu_custom_call.1} parent=5 // pred_fallthru
        _
      %p137 = scmp.lt.s32.totalorder %s18, 4
      // Predicated region
      $region13: #{tpu_custom_call.1} parent=5 // pred_check
        %p138 = pneg %p137
      $region14: #{tpu_custom_call.1} parent=5 // pred_check_branch
        %140 = sbr.rel (%p138) target = $region16
      $region15: #{tpu_custom_call.1} parent=5 // pred_region
        // Predicated region
        $region17: #{tpu_custom_call.1} parent=15 // pred_check
          %p141 = pneg %p38
        $region18: #{tpu_custom_call.1} parent=15 // pred_check_branch
          %143 = sbr.rel (%p141) target = $region20
        $region19: #{tpu_custom_call.1} parent=15 // pred_region
          %s144 = sand.u32 %s28, 1
          %s145 = scalar_lea.sflag [#allocation3], %s144
          %s146 = sand.u32 %s28, 1
          %s147 = smul.addr %s146, 8
          %s148 = scalar_lea.vmem [#allocation2], %s147
          %s149 = smul.u32 2, %s18
          %151 = vsyncadd %s145, 0
          %s152 = smul.addr %s149, 4
          %s153 = scalar_lea.hbm %s0, %s152
          %s155 = sshll.u32 %s153, 4
          %s156 = int_to_ptr.hbm [resolvable:$true] %s155
          %s157 = sshll.u32 %s148, 4
          %s158 = int_to_ptr.vmem [resolvable:$true] %s157
          %160 = dma.hbm_to_vmem [thread:$0]  %s156, 128, %s158, %s145
        $region20: #{tpu_custom_call.1} parent=15 // pred_fallthru
          _
        // Predicated region
        $region21: #{tpu_custom_call.1} parent=15 // pred_check
          %p161 = pneg %p64
        $region22: #{tpu_custom_call.1} parent=15 // pred_check_branch
          %163 = sbr.rel (%p161) target = $region24
        $region23: #{tpu_custom_call.1} parent=15 // pred_region
          %s164 = sand.u32 %s18, 1
          %s165 = scalar_lea.sflag [#allocation6], %s164
          %s166 = sand.u32 %s54, 1
          %s167 = smul.addr %s166, 8
          %s168 = scalar_lea.vmem [#allocation5], %s167
          %s169 = smul.u32 2, %s18
          %171 = vsyncadd %s165, 0
          %s172 = smul.addr %s169, 4
          %s173 = scalar_lea.hbm %s1, %s172
          %s175 = sshll.u32 %s173, 4
          %s176 = int_to_ptr.hbm [resolvable:$true] %s175
          %s177 = sshll.u32 %s168, 4
          %s178 = int_to_ptr.vmem [resolvable:$true] %s177
          %180 = dma.hbm_to_vmem [thread:$0]  %s176, 128, %s178, %s165
        $region24: #{tpu_custom_call.1} parent=15 // pred_fallthru
          _
        // Predicated region
        $region25: #{tpu_custom_call.1} parent=15 // pred_check
          %p181 = pneg %p90
        $region26: #{tpu_custom_call.1} parent=15 // pred_check_branch
          %183 = sbr.rel (%p181) target = $region28
        $region27: #{tpu_custom_call.1} parent=15 // pred_region
          %s184 = sand.u32 %s18, 1
          %s185 = scalar_lea.sflag [#allocation6], %s184
          %s186 = sand.u32 %s80, 1
          %s187 = smul.addr %s186, 32
          %s188 = scalar_lea.vmem [#allocation7], %s187
          %s189 = smul.u32 2, %s18
          %191 = vsyncadd %s185, 0
          %s192 = scalar_lea.hbm %s2, %s189
          %s193 = sshll.u32 %s192, 4
          %s194 = int_to_ptr.hbm [resolvable:$true] %s193
          %s195 = sshll.u32 %s188, 4
          %s196 = int_to_ptr.vmem [resolvable:$true] %s195
          %201 = dma.hbm_to_vmem [thread:$0]  %s194, 512, %s196, %s185, 128, 32, 2
        $region28: #{tpu_custom_call.1} parent=15 // pred_fallthru
          _
      $region16: #{tpu_custom_call.1} parent=5 // pred_fallthru
        _
      %p202 = scmp.le.s32.totalorder 1, %s18
      %p203 = scmp.lt.s32.totalorder %s18, 5
      %p204 = pnand %p202, %p203
      %p205 = pneg %p204
      // Predicated region
      $region29: #{tpu_custom_call.1} parent=5 // pred_check
        _
      $region30: #{tpu_custom_call.1} parent=5 // pred_check_branch
        %207 = sbr.rel (%p204) target = $region32
      $region31: #{tpu_custom_call.1} parent=5 // pred_region
        %s208 = ssub.s32 %s18, 1
        %s209 = sand.u32 %s31, 1
        %s210 = scalar_lea.sflag [#allocation3], %s209
        %s211 = sand.u32 %s31, 1
        %s212 = smul.addr %s211, 8
        %s213 = scalar_lea.vmem [#allocation2], %s212
        // Predicated region
        $region33: #{tpu_custom_call.1} parent=31 // pred_check
          %p214 = pneg %p44
        $region34: #{tpu_custom_call.1} parent=31 // pred_check_branch
          %216 = sbr.rel (%p214) target = $region36
        $region35: #{tpu_custom_call.1} parent=31 // pred_region
          %218 = dma.done %s210, 128
        $region36: #{tpu_custom_call.1} parent=31 // pred_fallthru
          _
        %s219 = sand.u32 %s23, 1
        %s220 = scalar_lea.sflag [#allocation6], %s219
        %s221 = sand.u32 %s57, 1
        %s222 = smul.addr %s221, 8
        %s223 = scalar_lea.vmem [#allocation5], %s222
        // Predicated region
        $region37: #{tpu_custom_call.1} parent=31 // pred_check
          %p224 = pneg %p70
        $region38: #{tpu_custom_call.1} parent=31 // pred_check_branch
          %226 = sbr.rel (%p224) target = $region40
        $region39: #{tpu_custom_call.1} parent=31 // pred_region
          %228 = dma.done %s220, 128
        $region40: #{tpu_custom_call.1} parent=31 // pred_fallthru
          _
        %s229 = sand.u32 %s23, 1
        %s230 = scalar_lea.sflag [#allocation6], %s229
        %s231 = sand.u32 %s83, 1
        %s232 = smul.addr %s231, 32
        %s233 = scalar_lea.vmem [#allocation7], %s232
        // Predicated region
        $region41: #{tpu_custom_call.1} parent=31 // pred_check
          %p234 = pneg %p96
        $region42: #{tpu_custom_call.1} parent=31 // pred_check_branch
          %236 = sbr.rel (%p234) target = $region44
        $region43: #{tpu_custom_call.1} parent=31 // pred_region
          %238 = dma.done %s230, 512
        $region44: #{tpu_custom_call.1} parent=31 // pred_fallthru
          _
        %s239 = sand.u32 %s31, 1
        %s240 = scalar_lea.sflag [#allocation3], %s239
        %s241 = sand.u32 %s31, 1
        %s242 = smul.addr %s241, 8
        %s243 = scalar_lea.vmem [#allocation2], %s242
        %p244 = pneg %p44
        %p245 = pneg %p41
        %s246 = sand.u32 %s23, 1
        %s247 = scalar_lea.sflag [#allocation6], %s246
        %s248 = sand.u32 %s57, 1
        %s249 = smul.addr %s248, 8
        %s250 = scalar_lea.vmem [#allocation5], %s249
        %p251 = pneg %p70
        %p252 = pneg %p67
        %s253 = sand.u32 %s23, 1
        %s254 = scalar_lea.sflag [#allocation6], %s253
        %s255 = sand.u32 %s83, 1
        %s256 = smul.addr %s255, 32
        %s257 = scalar_lea.vmem [#allocation7], %s256
        %p258 = pneg %p96
        %p259 = pneg %p93
        %p260 = pneg %p122
        %p261 = pneg %p119
        %s262 = sand.u32 %s109, 1
        %s263 = scalar_lea.sflag [#allocation4], %s262
        %s264 = sand.u32 %s109, 1
        %s265 = smul.addr %s264, 128
        %s266 = scalar_lea.vmem [#allocation8], %s265
        %s267 = smul.u32 2, %s23
        %s268 = smul.u32 2, %s23
        %s269 = smul.u32 2, %s23
        %s270 = smul.u32 2, %s23
        %v271 = vld [vmem:[%s213] sm:$0xff]
        %v272 = vadd.f32 %v271, 0.0001
        %v273 = vlog2.pop %v272
        %v274 = vmul.f32 %v273, 0.6931472
        %v275 = vld [vmem:[%s223] sm:$0xff]
        %v276 = vadd.f32 %v274, %v275
        %v278 = vrot.slane %v276, 5
        %v279 = vrot.slane %v278, 4
        %v281 = vmax.f32 %v276, %v279
        %v282 = vrot.slane %v276, 6
        %v283 = vrot.slane %v282, 4
        %v285 = vmax.f32 %v281, %v283
        %v286 = vrot.slane %v276, 7
        %v287 = vrot.slane %v286, 4
        %v289 = vmax.f32 %v285, %v287
        %v290 = vsub.f32 %v276, %v289
        %v291 = vmul.f32 %v290, 1.442695
        %v292 = vpow.pop %v291
        %v294 = vrot.slane %v289, 7
        %v296 = vsub.f32 %v276, %v294
        %v297 = vmul.f32 %v296, 1.442695
        %v298 = vpow.pop %v297
        %v300 = vrot.slane %v298, 5
        %v301 = vrot.slane %v300, 4
        %v303 = vadd.f32 %v292, %v301
        %v304 = vrot.slane %v289, 6
        %v306 = vsub.f32 %v276, %v304
        %v307 = vmul.f32 %v306, 1.442695
        %v308 = vpow.pop %v307
        %v310 = vrot.slane %v308, 6
        %v311 = vrot.slane %v310, 4
        %v313 = vadd.f32 %v303, %v311
        %v314 = vrot.slane %v289, 5
        %v316 = vsub.f32 %v276, %v314
        %v317 = vmul.f32 %v316, 1.442695
        %v318 = vpow.pop %v317
        %v320 = vrot.slane %v318, 7
        %v321 = vrot.slane %v320, 4
        %v323 = vadd.f32 %v313, %v321
        %v325 = vperm.slane %v292, 0
        %v326 = vperm.slane %v292, 4
        %v330 = vperm.slane %v303, 0
        %v331 = vperm.slane %v303, 4
        %v335 = vperm.slane %v313, 0
        %v336 = vperm.slane %v313, 4
        %vm339 = vcmask 1040384
        %v340 = vsel %vm339, 0.0, %v325
        %v341 = vsel %vm339, 0.0, %v326
        %vm342 = vcmask 1041408
        %v343 = vsel %vm342, %v340, %v330
        %v344 = vsel %vm342, %v341, %v331
        %vm345 = vcmask 1042432
        %v346 = vsel %vm345, %v343, %v335
        %v347 = vsel %vm345, %v344, %v336
        %v349 = vperm.slane %v323, 0
        %v350 = vperm.slane %v323, 4
        %v353 = vsel %vm339, %v325, %v330
        %v354 = vsel %vm339, %v326, %v331
        %v355 = vsel %vm342, %v353, %v335
        %v356 = vsel %vm342, %v354, %v336
        %v357 = vsel %vm345, %v355, %v349
        %v358 = vsel %vm345, %v356, %v350
        %v359 = vld [vmem:[%s233] sm:$0x3]
        %v360 = vld [vmem:[%s233 + $0x2] sm:$0x3]
        %v361 = vld [vmem:[%s233 + $0x4] sm:$0x3]
        %v362 = vld [vmem:[%s233 + $0x6] sm:$0x3]
        %v363 = vld [vmem:[%s233 + $0x8] sm:$0x3]
        %v364 = vld [vmem:[%s233 + $0xa] sm:$0x3]
        %v365 = vld [vmem:[%s233 + $0xc] sm:$0x3]
        %v366 = vld [vmem:[%s233 + $0xe] sm:$0x3]
        %v367 = vld [vmem:[%s233 + $0x10] sm:$0x3]
        %v368 = vld [vmem:[%s233 + $0x12] sm:$0x3]
        %v369 = vld [vmem:[%s233 + $0x14] sm:$0x3]
        %v370 = vld [vmem:[%s233 + $0x16] sm:$0x3]
        %v371 = vld [vmem:[%s233 + $0x18] sm:$0x3]
        %v372 = vld [vmem:[%s233 + $0x1a] sm:$0x3]
        %v373 = vld [vmem:[%s233 + $0x1c] sm:$0x3]
        %v374 = vld [vmem:[%s233 + $0x1e] sm:$0x3]
        %v375 = vrot.slane %v323, 3
        %v376 = vsel %vm339, %v323, %v375
        %v378 = vmul.f32 %v359, %v376
        %v379 = vmul.f32 %v360, %v376
        %v380 = vmul.f32 %v361, %v376
        %v381 = vmul.f32 %v362, %v376
        %v382 = vmul.f32 %v363, %v376
        %v383 = vmul.f32 %v364, %v376
        %v384 = vmul.f32 %v365, %v376
        %v385 = vmul.f32 %v366, %v376
        %v386 = vmul.f32 %v367, %v376
        %v387 = vmul.f32 %v368, %v376
        %v388 = vmul.f32 %v369, %v376
        %v389 = vmul.f32 %v370, %v376
        %v390 = vmul.f32 %v371, %v376
        %v391 = vmul.f32 %v372, %v376
        %v392 = vmul.f32 %v373, %v376
        %v393 = vmul.f32 %v374, %v376
        %v410 = vperm.slane %v378, 0
        %v411 = vperm.slane %v378, 1
        %v412 = vperm.slane %v379, 0
        %v413 = vperm.slane %v379, 1
        %v414 = vperm.slane %v380, 0
        %v415 = vperm.slane %v380, 1
        %v416 = vperm.slane %v381, 0
        %v417 = vperm.slane %v381, 1
        %v418 = vperm.slane %v382, 0
        %v419 = vperm.slane %v382, 1
        %v420 = vperm.slane %v383, 0
        %v421 = vperm.slane %v383, 1
        %v422 = vperm.slane %v384, 0
        %v423 = vperm.slane %v384, 1
        %v424 = vperm.slane %v385, 0
        %v425 = vperm.slane %v385, 1
        %v426 = vperm.slane %v386, 0
        %v427 = vperm.slane %v386, 1
        %v428 = vperm.slane %v387, 0
        %v429 = vperm.slane %v387, 1
        %v430 = vperm.slane %v388, 0
        %v431 = vperm.slane %v388, 1
        %v432 = vperm.slane %v389, 0
        %v433 = vperm.slane %v389, 1
        %v434 = vperm.slane %v390, 0
        %v435 = vperm.slane %v390, 1
        %v436 = vperm.slane %v391, 0
        %v437 = vperm.slane %v391, 1
        %v438 = vperm.slane %v392, 0
        %v439 = vperm.slane %v392, 1
        %v440 = vperm.slane %v393, 0
        %v441 = vperm.slane %v393, 1
        %vm474 = vcmp.ge.f32.partialorder %v410, %v346
        %vm475 = vcmp.ge.f32.partialorder %v411, %v347
        %vm476 = vcmp.ge.f32.partialorder %v412, %v346
        %vm477 = vcmp.ge.f32.partialorder %v413, %v347
        %vm478 = vcmp.ge.f32.partialorder %v414, %v346
        %vm479 = vcmp.ge.f32.partialorder %v415, %v347
        %vm480 = vcmp.ge.f32.partialorder %v416, %v346
        %vm481 = vcmp.ge.f32.partialorder %v417, %v347
        %vm482 = vcmp.ge.f32.partialorder %v418, %v346
        %vm483 = vcmp.ge.f32.partialorder %v419, %v347
        %vm484 = vcmp.ge.f32.partialorder %v420, %v346
        %vm485 = vcmp.ge.f32.partialorder %v421, %v347
        %vm486 = vcmp.ge.f32.partialorder %v422, %v346
        %vm487 = vcmp.ge.f32.partialorder %v423, %v347
        %vm488 = vcmp.ge.f32.partialorder %v424, %v346
        %vm489 = vcmp.ge.f32.partialorder %v425, %v347
        %vm490 = vcmp.ge.f32.partialorder %v426, %v346
        %vm491 = vcmp.ge.f32.partialorder %v427, %v347
        %vm492 = vcmp.ge.f32.partialorder %v428, %v346
        %vm493 = vcmp.ge.f32.partialorder %v429, %v347
        %vm494 = vcmp.ge.f32.partialorder %v430, %v346
        %vm495 = vcmp.ge.f32.partialorder %v431, %v347
        %vm496 = vcmp.ge.f32.partialorder %v432, %v346
        %vm497 = vcmp.ge.f32.partialorder %v433, %v347
        %vm498 = vcmp.ge.f32.partialorder %v434, %v346
        %vm499 = vcmp.ge.f32.partialorder %v435, %v347
        %vm500 = vcmp.ge.f32.partialorder %v436, %v346
        %vm501 = vcmp.ge.f32.partialorder %v437, %v347
        %vm502 = vcmp.ge.f32.partialorder %v438, %v346
        %vm503 = vcmp.ge.f32.partialorder %v439, %v347
        %vm504 = vcmp.ge.f32.partialorder %v440, %v346
        %vm505 = vcmp.ge.f32.partialorder %v441, %v347
        %vm506 = vcmp.lt.f32.partialorder %v410, %v357
        %vm507 = vcmp.lt.f32.partialorder %v411, %v358
        %vm508 = vcmp.lt.f32.partialorder %v412, %v357
        %vm509 = vcmp.lt.f32.partialorder %v413, %v358
        %vm510 = vcmp.lt.f32.partialorder %v414, %v357
        %vm511 = vcmp.lt.f32.partialorder %v415, %v358
        %vm512 = vcmp.lt.f32.partialorder %v416, %v357
        %vm513 = vcmp.lt.f32.partialorder %v417, %v358
        %vm514 = vcmp.lt.f32.partialorder %v418, %v357
        %vm515 = vcmp.lt.f32.partialorder %v419, %v358
        %vm516 = vcmp.lt.f32.partialorder %v420, %v357
        %vm517 = vcmp.lt.f32.partialorder %v421, %v358
        %vm518 = vcmp.lt.f32.partialorder %v422, %v357
        %vm519 = vcmp.lt.f32.partialorder %v423, %v358
        %vm520 = vcmp.lt.f32.partialorder %v424, %v357
        %vm521 = vcmp.lt.f32.partialorder %v425, %v358
        %vm522 = vcmp.lt.f32.partialorder %v426, %v357
        %vm523 = vcmp.lt.f32.partialorder %v427, %v358
        %vm524 = vcmp.lt.f32.partialorder %v428, %v357
        %vm525 = vcmp.lt.f32.partialorder %v429, %v358
        %vm526 = vcmp.lt.f32.partialorder %v430, %v357
        %vm527 = vcmp.lt.f32.partialorder %v431, %v358
        %vm528 = vcmp.lt.f32.partialorder %v432, %v357
        %vm529 = vcmp.lt.f32.partialorder %v433, %v358
        %vm530 = vcmp.lt.f32.partialorder %v434, %v357
        %vm531 = vcmp.lt.f32.partialorder %v435, %v358
        %vm532 = vcmp.lt.f32.partialorder %v436, %v357
        %vm533 = vcmp.lt.f32.partialorder %v437, %v358
        %vm534 = vcmp.lt.f32.partialorder %v438, %v357
        %vm535 = vcmp.lt.f32.partialorder %v439, %v358
        %vm536 = vcmp.lt.f32.partialorder %v440, %v357
        %vm537 = vcmp.lt.f32.partialorder %v441, %v358
        %vm538 = vmand %vm474, %vm506
        %vm539 = vmand %vm475, %vm507
        %vm540 = vmand %vm476, %vm508
        %vm541 = vmand %vm477, %vm509
        %vm542 = vmand %vm478, %vm510
        %vm543 = vmand %vm479, %vm511
        %vm544 = vmand %vm480, %vm512
        %vm545 = vmand %vm481, %vm513
        %vm546 = vmand %vm482, %vm514
        %vm547 = vmand %vm483, %vm515
        %vm548 = vmand %vm484, %vm516
        %vm549 = vmand %vm485, %vm517
        %vm550 = vmand %vm486, %vm518
        %vm551 = vmand %vm487, %vm519
        %vm552 = vmand %vm488, %vm520
        %vm553 = vmand %vm489, %vm521
        %vm554 = vmand %vm490, %vm522
        %vm555 = vmand %vm491, %vm523
        %vm556 = vmand %vm492, %vm524
        %vm557 = vmand %vm493, %vm525
        %vm558 = vmand %vm494, %vm526
        %vm559 = vmand %vm495, %vm527
        %vm560 = vmand %vm496, %vm528
        %vm561 = vmand %vm497, %vm529
        %vm562 = vmand %vm498, %vm530
        %vm563 = vmand %vm499, %vm531
        %vm564 = vmand %vm500, %vm532
        %vm565 = vmand %vm501, %vm533
        %vm566 = vmand %vm502, %vm534
        %vm567 = vmand %vm503, %vm535
        %vm568 = vmand %vm504, %vm536
        %vm569 = vmand %vm505, %vm537
        %v570 = vsel %vm538, 1, 0
        %v571 = vsel %vm539, 1, 0
        %v572 = vsel %vm540, 1, 0
        %v573 = vsel %vm541, 1, 0
        %v574 = vsel %vm542, 1, 0
        %v575 = vsel %vm543, 1, 0
        %v576 = vsel %vm544, 1, 0
        %v577 = vsel %vm545, 1, 0
        %v578 = vsel %vm546, 1, 0
        %v579 = vsel %vm547, 1, 0
        %v580 = vsel %vm548, 1, 0
        %v581 = vsel %vm549, 1, 0
        %v582 = vsel %vm550, 1, 0
        %v583 = vsel %vm551, 1, 0
        %v584 = vsel %vm552, 1, 0
        %v585 = vsel %vm553, 1, 0
        %v586 = vsel %vm554, 1, 0
        %v587 = vsel %vm555, 1, 0
        %v588 = vsel %vm556, 1, 0
        %v589 = vsel %vm557, 1, 0
        %v590 = vsel %vm558, 1, 0
        %v591 = vsel %vm559, 1, 0
        %v592 = vsel %vm560, 1, 0
        %v593 = vsel %vm561, 1, 0
        %v594 = vsel %vm562, 1, 0
        %v595 = vsel %vm563, 1, 0
        %v596 = vsel %vm564, 1, 0
        %v597 = vsel %vm565, 1, 0
        %v598 = vsel %vm566, 1, 0
        %v599 = vsel %vm567, 1, 0
        %v600 = vsel %vm568, 1, 0
        %v601 = vsel %vm569, 1, 0
        %v602 = vcvt.s32.f32 %v570
        %v603 = vcvt.s32.f32 %v571
        %v604 = vcvt.s32.f32 %v572
        %v605 = vcvt.s32.f32 %v573
        %v606 = vcvt.s32.f32 %v574
        %v607 = vcvt.s32.f32 %v575
        %v608 = vcvt.s32.f32 %v576
        %v609 = vcvt.s32.f32 %v577
        %v610 = vcvt.s32.f32 %v578
        %v611 = vcvt.s32.f32 %v579
        %v612 = vcvt.s32.f32 %v580
        %v613 = vcvt.s32.f32 %v581
        %v614 = vcvt.s32.f32 %v582
        %v615 = vcvt.s32.f32 %v583
        %v616 = vcvt.s32.f32 %v584
        %v617 = vcvt.s32.f32 %v585
        %v618 = vcvt.s32.f32 %v586
        %v619 = vcvt.s32.f32 %v587
        %v620 = vcvt.s32.f32 %v588
        %v621 = vcvt.s32.f32 %v589
        %v622 = vcvt.s32.f32 %v590
        %v623 = vcvt.s32.f32 %v591
        %v624 = vcvt.s32.f32 %v592
        %v625 = vcvt.s32.f32 %v593
        %v626 = vcvt.s32.f32 %v594
        %v627 = vcvt.s32.f32 %v595
        %v628 = vcvt.s32.f32 %v596
        %v629 = vcvt.s32.f32 %v597
        %v630 = vcvt.s32.f32 %v598
        %v631 = vcvt.s32.f32 %v599
        %v632 = vcvt.s32.f32 %v600
        %v633 = vcvt.s32.f32 %v601
        %v666 = vrot.slane %v603, 4
        %v667 = vrot.slane %v605, 4
        %v668 = vrot.slane %v607, 4
        %v669 = vrot.slane %v609, 4
        %v670 = vrot.slane %v611, 4
        %v671 = vrot.slane %v613, 4
        %v672 = vrot.slane %v615, 4
        %v673 = vrot.slane %v617, 4
        %v674 = vrot.slane %v619, 4
        %v675 = vrot.slane %v621, 4
        %v676 = vrot.slane %v623, 4
        %v677 = vrot.slane %v625, 4
        %v678 = vrot.slane %v627, 4
        %v679 = vrot.slane %v629, 4
        %v680 = vrot.slane %v631, 4
        %v681 = vrot.slane %v633, 4
        %vm682 = vcmask 1043456
        %v683 = vsel %vm682, %v602, %v666
        %v684 = vsel %vm682, %v604, %v667
        %v685 = vsel %vm682, %v606, %v668
        %v686 = vsel %vm682, %v608, %v669
        %v687 = vsel %vm682, %v610, %v670
        %v688 = vsel %vm682, %v612, %v671
        %v689 = vsel %vm682, %v614, %v672
        %v690 = vsel %vm682, %v616, %v673
        %v691 = vsel %vm682, %v618, %v674
        %v692 = vsel %vm682, %v620, %v675
        %v693 = vsel %vm682, %v622, %v676
        %v694 = vsel %vm682, %v624, %v677
        %v695 = vsel %vm682, %v626, %v678
        %v696 = vsel %vm682, %v628, %v679
        %v697 = vsel %vm682, %v630, %v680
        %v698 = vsel %vm682, %v632, %v681
        %715 = vst [vmem:[%s266] sm:$0xff] %v683
        %716 = vst [vmem:[%s266 + $0x8] sm:$0xff] %v684
        %717 = vst [vmem:[%s266 + $0x10] sm:$0xff] %v685
        %718 = vst [vmem:[%s266 + $0x18] sm:$0xff] %v686
        %719 = vst [vmem:[%s266 + $0x20] sm:$0xff] %v687
        %720 = vst [vmem:[%s266 + $0x28] sm:$0xff] %v688
        %721 = vst [vmem:[%s266 + $0x30] sm:$0xff] %v689
        %722 = vst [vmem:[%s266 + $0x38] sm:$0xff] %v690
        %723 = vst [vmem:[%s266 + $0x40] sm:$0xff] %v691
        %724 = vst [vmem:[%s266 + $0x48] sm:$0xff] %v692
        %725 = vst [vmem:[%s266 + $0x50] sm:$0xff] %v693
        %726 = vst [vmem:[%s266 + $0x58] sm:$0xff] %v694
        %727 = vst [vmem:[%s266 + $0x60] sm:$0xff] %v695
        %728 = vst [vmem:[%s266 + $0x68] sm:$0xff] %v696
        %729 = vst [vmem:[%s266 + $0x70] sm:$0xff] %v697
        %730 = vst [vmem:[%s266 + $0x78] sm:$0xff] %v698
        %s731 = sand.u32 %s109, 1
        %s732 = scalar_lea.sflag [#allocation4], %s731
        %s733 = sand.u32 %s109, 1
        %s734 = smul.addr %s733, 128
        %s735 = scalar_lea.vmem [#allocation8], %s734
        // Predicated region
        $region45: #{tpu_custom_call.1} parent=31 // pred_check
          %p736 = pneg %p119
        $region46: #{tpu_custom_call.1} parent=31 // pred_check_branch
          %738 = sbr.rel (%p736) target = $region48
        $region47: #{tpu_custom_call.1} parent=31 // pred_region
          %s739 = smul.u32 2, %s23
          %741 = vsyncadd %s732, 0
          %s742 = smul.addr %s739, 4
          %s743 = scalar_lea.hbm %s3, %s742
          %s744 = sshll.u32 %s735, 4
          %s745 = int_to_ptr.vmem [resolvable:$true] %s744
          %s746 = sshll.u32 %s743, 4
          %s747 = int_to_ptr.hbm [resolvable:$true] %s746
          %752 = dma.vmem_to_hbm [thread:$0]  %s745, 2048, %s747, %s732, 128, 512, 8
        $region48: #{tpu_custom_call.1} parent=31 // pred_fallthru
          _
      $region32: #{tpu_custom_call.1} parent=5 // pred_fallthru
        _
      %p753 = scmp.le.s32.totalorder 2, %s18
      // Predicated region
      $region49: #{tpu_custom_call.1} parent=5 // pred_check
        %p754 = pneg %p753
      $region50: #{tpu_custom_call.1} parent=5 // pred_check_branch
        %756 = sbr.rel (%p754) target = $region52
      $region51: #{tpu_custom_call.1} parent=5 // pred_region
        %s757 = ssub.s32 %s18, 2
        // Predicated region
        $region53: #{tpu_custom_call.1} parent=51 // pred_check
          %p758 = pneg %p125
        $region54: #{tpu_custom_call.1} parent=51 // pred_check_branch
          %760 = sbr.rel (%p758) target = $region56
        $region55: #{tpu_custom_call.1} parent=51 // pred_region
          %s761 = sand.u32 %s110, 1
          %s762 = scalar_lea.sflag [#allocation4], %s761
          %s763 = sand.u32 %s110, 1
          %s764 = smul.addr %s763, 128
          %s765 = scalar_lea.vmem [#allocation8], %s764
          %767 = dma.done %s762, 2048
        $region56: #{tpu_custom_call.1} parent=51 // pred_fallthru
          _
      $region52: #{tpu_custom_call.1} parent=5 // pred_fallthru
        _
    $region6: #{tpu_custom_call.1} parent=1 // loop_footer
      %s22 = sadd.s32 1, %s18
    $region7: #{tpu_custom_call.1} parent=1 // loop_footer_branch
      %17 = sbr.rel target = $region3
    $region8: #{tpu_custom_call.1} parent=1 // loop_exit
      _
    %768 = vsyncpa [#allocation3], 1
    %s769 = scalar_lea.sflag [#allocation3], 1
    %770 = vsyncpa %s769, 1
    %771 = vsyncpa [#allocation6], 1
    %s772 = scalar_lea.sflag [#allocation6], 1
    %773 = vsyncpa %s772, 1
    %774 = vsyncpa [#allocation4], 1
    %s775 = scalar_lea.sflag [#allocation4], 1
    %776 = vsyncpa %s775, 1

</llo_original>
